<compile_context>
chip_gen: v7x
topology: tpu7x:2x2x1
jax: 0.10.0
libtpu: 0.0.40
codegen_flags: <defaults>
</compile_context>

<pallas_src>
import functools

import jax
import jax.numpy as jnp
from jax.experimental import pallas as pl
from jax.experimental.pallas import tpu as pltpu


def _linear_relu_kernel(x_ref, w_ref, b_ref, o_ref):
    # x_ref: (TM, K)   w_ref: (K, N)   b_ref: (1, N) f32   o_ref: (TM, N)
    acc = jnp.dot(x_ref[...], w_ref[...], preferred_element_type=jnp.float32)
    acc = acc + b_ref[...]                       # f32 bias broadcast over rows
    o_ref[...] = jnp.maximum(acc, 0.0).astype(o_ref.dtype)


@functools.lru_cache(maxsize=None)
def _vmem_limit_bytes():
    """Per-generation scoped-VMEM limit: ~3/4 of per-core physical VMEM
    (~96 MiB on v5e/v6e, ~48 MiB on v7x), leaving headroom for Mosaic's own
    scratch.  Falls back to a v7x-safe 48 MiB if the query is unavailable."""
    try:
        cap = int(pltpu.get_tpu_info().vmem_capacity_bytes)
    except Exception:                             # older API / non-TPU backend
        cap = 64 * 1024 * 1024
    return (cap // 4) * 3


def _choose_row_tile(m, k, n, io_itemsize, vmem_limit):
    """Largest aligned row tile whose live set fits the scoped-VMEM limit.

    Live set = 1x resident weight + f32 bias (single-buffered, grid-invariant)
             + 2x (x tile + out tile)          (double-buffered pipeline).
    """
    align = 8 if io_itemsize >= 4 else 16         # bf16 packs 16 sublanes/vreg
    budget = vmem_limit - 2 * 1024 * 1024         # headroom for Mosaic scratch
    fixed = k * n * io_itemsize + n * 4           # weight (io dtype) + f32 bias
    per_row = 2 * (k + n) * io_itemsize           # x + out tiles, double-buffered
    tm = (budget - fixed) // max(per_row, 1)
    tm = int(max(align, min(tm, 8192)))           # cap per perf review
    tm = (tm // align) * align
    if tm >= m:
        return m                                  # single full-extent block
    return tm


@functools.partial(jax.jit, static_argnames=("io_dtype",))
def linear_embedding_forward(x, weight, bias, io_dtype=None):
    """Pallas equivalent of F.relu(nn.Linear(input_size, output_size)(x)).

    x:        (..., input_size)
    weight:   (output_size, input_size)   -- PyTorch nn.Linear convention
    bias:     (output_size,)
    io_dtype: optional kernel I/O dtype.  Pass jnp.bfloat16 on v6e/v7x to
              halve HBM traffic (accumulation stays f32).  None keeps x.dtype.
    """
    in_features = x.shape[-1]
    out_features = weight.shape[0]
    lead_shape = x.shape[:-1]

    io_dtype = jnp.dtype(x.dtype if io_dtype is None else io_dtype)
    io_itemsize = io_dtype.itemsize

    x2d = x.reshape(-1, in_features).astype(io_dtype)           # (M, K)
    m = x2d.shape[0]

    # One-time cast/transpose of the small weight, fused by XLA outside the
    # kernel: (N, K) -> (K, N) so the MXU sees the canonical layout every step.
    w_t = weight.T.astype(io_dtype)                             # (K, N)
    b2d = bias.reshape(1, out_features).astype(jnp.float32)     # f32 bias add

    vmem_limit = _vmem_limit_bytes()
    tm = _choose_row_tile(m, in_features, out_features, io_itemsize, vmem_limit)
    grid = (pl.cdiv(m, tm),)

    cost = pl.CostEstimate(
        flops=2 * m * in_features * out_features,
        transcendentals=0,
        bytes_accessed=((m * in_features + in_features * out_features) * io_itemsize
                        + out_features * 4                       # f32 bias
                        + m * out_features * io_itemsize))       # unpadded output

    # Grid-invariant operands: resident across the whole grid, single-buffered.
    invariant = dict(pipeline_mode=pl.Buffered(buffer_count=1))

    out2d = pl.pallas_call(
        _linear_relu_kernel,
        out_shape=jax.ShapeDtypeStruct((m, out_features), io_dtype),
        grid_spec=pltpu.PrefetchScalarGridSpec(
            num_scalar_prefetch=0,
            grid=grid,
            in_specs=[
                pl.BlockSpec((tm, in_features), lambda i: (i, 0)),           # x rows
                pl.BlockSpec((in_features, out_features), lambda i: (0, 0),
                             **invariant),                                   # weight
                pl.BlockSpec((1, out_features), lambda i: (0, 0),
                             **invariant),                                   # bias
            ],
            out_specs=pl.BlockSpec((tm, out_features), lambda i: (i, 0)),
        ),
        compiler_params=pltpu.CompilerParams(
            dimension_semantics=("parallel",),       # shard M across TCs on v7x
            vmem_limit_bytes=int(vmem_limit)),
        cost_estimate=cost,
    )(x2d, w_t, b2d)

    # NOTE: if in/out_features ever grow so the resident K*N weight approaches
    # the VMEM limit (esp. v7x's 64 MiB), add an N "parallel" grid axis and,
    # for large K, a K reduction axis with f32 acc scratch + pl.when finalize.
    return out2d.reshape(*lead_shape, out_features)


def init_linear_embedding_params(key, input_size, output_size, dtype=jnp.float32):
    """Deterministic PyTorch-style (kaiming-uniform-ish) init for nn.Linear."""
    k_w, k_b = jax.random.split(key)
    bound = 1.0 / jnp.sqrt(jnp.asarray(input_size, dtype=jnp.float32))
    weight = jax.random.uniform(
        k_w, (output_size, input_size), dtype=dtype, minval=-bound, maxval=bound)
    bias = jax.random.uniform(
        k_b, (output_size,), dtype=dtype, minval=-bound, maxval=bound)
    return weight, bias


if __name__ == "__main__":
    # Shapes consistent with the module: trajectory-encoder style input of
    # shape (batch, seq, input_size) -> (batch, seq, social_latent_size).
    batch, seq = 2, 8
    input_size = 4
    social_latent_size = 32

    key = jax.random.PRNGKey(0)
    k_x, k_p = jax.random.split(key)

    x = jax.random.normal(k_x, (batch, seq, input_size), dtype=jnp.float32)
    weight, bias = init_linear_embedding_params(
        k_p, input_size, social_latent_size)

    ref = jnp.maximum(jnp.einsum("bsi,oi->bso", x, weight) + bias, 0.0)

    # f32 path: exact against the plain-JAX reference.
    out = linear_embedding_forward(x, weight, bias)
    out = jax.block_until_ready(out)
    assert out.shape == (batch, seq, social_latent_size)
    assert out.dtype == x.dtype
    assert jnp.allclose(out, ref, atol=1e-5, rtol=1e-5)

    # bf16-I/O path (the v6e/v7x memory-roofline optimization), loose tolerance.
    out_bf16 = linear_embedding_forward(x, weight, bias, io_dtype=jnp.bfloat16)
    out_bf16 = jax.block_until_ready(out_bf16)
    assert out_bf16.shape == (batch, seq, social_latent_size)
    assert out_bf16.dtype == jnp.bfloat16
    assert jnp.allclose(out_bf16.astype(jnp.float32), ref, atol=1e-1, rtol=1e-1)

    print("KERNEL_OK")
</pallas_src>

<mosaic_0001>
module attributes {stable_mosaic.version = 11 : i64} {
  func.func @_linear_relu_kernel(%arg0: i32, %arg1: memref<16x4xf32, #tpu.memory_space<vmem>>, %arg2: memref<4x32xf32, #tpu.memory_space<vmem>>, %arg3: memref<1x32xf32, #tpu.memory_space<vmem>>, %arg4: memref<16x32xf32, #tpu.memory_space<vmem>>) attributes {dimension_semantics = [#tpu.dimension_semantics<parallel>], iteration_bounds = array<i64: 1>, scalar_prefetch = 0 : i64, scratch_operands = 0 : i64, tpu.core_type = #tpu.core_type<tc>, window_params = [{transform_indices = @transform_0, window_bounds = array<i64: 16, 4>}, {pipeline_mode = #tpu.pipeline_mode<synchronous>, transform_indices = @transform_1, window_bounds = array<i64: 4, 32>}, {pipeline_mode = #tpu.pipeline_mode<synchronous>, transform_indices = @transform_2, window_bounds = array<i64: 1, 32>}, {transform_indices = @transform_3, window_bounds = array<i64: 16, 32>}]} {
    %c0 = arith.constant 0 : index
    %c0_0 = arith.constant 0 : index
    %0 = vector.load %arg1[%c0, %c0_0] : memref<16x4xf32, #tpu.memory_space<vmem>>, vector<16x4xf32>
    %c0_1 = arith.constant 0 : index
    %c0_2 = arith.constant 0 : index
    %1 = vector.load %arg2[%c0_1, %c0_2] : memref<4x32xf32, #tpu.memory_space<vmem>>, vector<4x32xf32>
    %cst = arith.constant dense<0.000000e+00> : vector<16x32xf32>
    %2 = tpu.matmul %0, %1, %cst {dimension_numbers = #tpu.dot_dimension_numbers<[1], [0], [0], [1], [0, 0, 1, 1], [], []>} : vector<16x4xf32>, vector<4x32xf32>, vector<16x32xf32> -> vector<16x32xf32>
    %c0_3 = arith.constant 0 : index
    %c0_4 = arith.constant 0 : index
    %3 = vector.load %arg3[%c0_3, %c0_4] : memref<1x32xf32, #tpu.memory_space<vmem>>, vector<1x32xf32>
    %4 = vector.broadcast %3 : vector<1x32xf32> to vector<16x32xf32>
    %5 = arith.addf %2, %4 : vector<16x32xf32>
    %cst_5 = arith.constant 0.000000e+00 : f32
    %6 = vector.broadcast %cst_5 : f32 to vector<16x32xf32>
    %7 = arith.maximumf %5, %6 : vector<16x32xf32>
    %c0_6 = arith.constant 0 : index
    %c0_7 = arith.constant 0 : index
    %8 = vector.load %arg4[%c0_6, %c0_7] : memref<16x32xf32, #tpu.memory_space<vmem>>, vector<16x32xf32>
    tpu.vector_store %arg4[%c0_6, %c0_7], %7 {strides = array<i32>} : memref<16x32xf32, #tpu.memory_space<vmem>>, vector<16x32xf32>,
    return
  }
  func.func @transform_0(%arg0: i32) -> (i32, i32) {
    %c0_i32 = arith.constant 0 : i32
    %c0_i32_0 = arith.constant 0 : i32
    return %arg0, %c0_i32 : i32, i32
  }
  func.func @transform_1(%arg0: i32) -> (i32, i32) {
    %c0_i32 = arith.constant 0 : i32
    %c0_i32_0 = arith.constant 0 : i32
    %c0_i32_1 = arith.constant 0 : i32
    return %c0_i32, %c0_i32_0 : i32, i32
  }
  func.func @transform_2(%arg0: i32) -> (i32, i32) {
    %c0_i32 = arith.constant 0 : i32
    %c0_i32_0 = arith.constant 0 : i32
    %c0_i32_1 = arith.constant 0 : i32
    return %c0_i32, %c0_i32_0 : i32, i32
  }
  func.func @transform_3(%arg0: i32) -> (i32, i32) {
    %c0_i32 = arith.constant 0 : i32
    %c0_i32_0 = arith.constant 0 : i32
    return %arg0, %c0_i32 : i32, i32
  }
}

</mosaic_0001>

<llo_original>
// kernel: linear_embedding_forward.1
$region0: #{linear_embedding_forward.1}
  #allocation0 [shape = 'u32[]', space=smem, size = 0x4, offset = 0x4, fixed_abs, tag = 'smem constant byte address 0x4 - core index']
  #allocation1 [shape = 'u32[144,128]{1,0:T(1,128)}', space=vmem, size = 0x12000, scoped, tag = 'internal scratch']
  %s0 = inlined_call_operand.vmem [shape: f32[16,4], index: 0, kind: input, shape index: {}]
  %s1 = inlined_call_operand.vmem [shape: f32[4,32], index: 1, kind: input, shape index: {}]
  %s2 = inlined_call_operand.vmem [shape: f32[1,32], index: 2, kind: input, shape index: {}]
  %s3 = inlined_call_operand.hbm [shape: f32[16,32], index: 3, kind: output, shape index: {}]
  %s4 = sld [smem:[#allocation0]]
  $region22: #{linear_embedding_forward.1} parent=0
    _
  %s6 = ssub.s32 1, %s4
  %s7 = scalar_select 0, %s6, %s4
  $region1: #{linear_embedding_forward.1} parent=0
    #allocation2 [shape = 'u8[8192]{0}', space=vmem, size = 0x2000, scoped, tag = 'output window, operand 0, single buffered']
    #allocation3 [shape = 's32[1]{0}', space=sflag, size = 0x4, scoped, tag = 'scoped memory for linear_embedding_forward.1']
    %8 = vsyncpa [#allocation3], 0
    // Predicated region
    $region2: #{linear_embedding_forward.1} parent=1 // pred_check
      _
    $region3: #{linear_embedding_forward.1} parent=1 // pred_check_branch
      %10 = sbr.rel (0) target = $region5
    $region4: #{linear_embedding_forward.1} parent=1 // pred_region
      _
    $region5: #{linear_embedding_forward.1} parent=1 // pred_fallthru
      _
    // Predicated region
    $region6: #{linear_embedding_forward.1} parent=1 // pred_check
      _
    $region7: #{linear_embedding_forward.1} parent=1 // pred_check_branch
      %12 = sbr.rel (0) target = $region9
    $region8: #{linear_embedding_forward.1} parent=1 // pred_region
      _
    $region9: #{linear_embedding_forward.1} parent=1 // pred_fallthru
      _
    // Predicated region
    $region10: #{linear_embedding_forward.1} parent=1 // pred_check
      _
    $region11: #{linear_embedding_forward.1} parent=1 // pred_check_branch
      %14 = sbr.rel (0) target = $region13
    $region12: #{linear_embedding_forward.1} parent=1 // pred_region
      _
    $region13: #{linear_embedding_forward.1} parent=1 // pred_fallthru
      _
    %v15 = vld [vmem:[%s0] sm:$0xff]
    %v16 = vld [vmem:[%s0 + $0x8] sm:$0xff]
    %v17 = vld [vmem:[%s1] sm:$0xf]
    %v18 = vld [vmem:[%s2] sm:$0x1]
    %v20 = vlaneseq
    %v21 = vshrl.u32 %v20, 7
    %v22 = vsub.s32 0, %v21
    %v23 = vrot.slane %v18, %v22
    %vm25 = vcmask 31744
    %v27 = vsel %vm25, %v15, 0
    %v30 = vsel %vm25, %v16, 0
    %vm32 = vcmask 1043456
    %v34 = vsel %vm32, %v17, 0
    %36 = vmatprep.subr.mxu0 0.0
    %37 = vmatpush1.msra.mxu0 %v34
    %38 = vmatprep.subr.mxu0 0.0
    %39 = vmatpush1.msra.mxu0 0.0
    %40 = vmatprep.subr.mxu0 0.0
    %41 = vmatpush1.msra.mxu0 0.0
    %42 = vmatprep.subr.mxu0 0.0
    %43 = vmatpush1.msra.mxu0 0.0
    %44 = vmatprep.subr.mxu0 0.0
    %45 = vmatpush1.msra.mxu0 0.0
    %46 = vmatprep.subr.mxu0 0.0
    %47 = vmatpush1.msra.mxu0 0.0
    %48 = vmatprep.subr.mxu0 0.0
    %49 = vmatpush1.msra.mxu0 0.0
    %50 = vmatprep.subr.mxu0 0.0
    %51 = vmatpush1.msra.mxu0 0.0
    %52 = vmatprep.subr.mxu0 0.0
    %53 = vmatpush1.msra.mxu0 0.0
    %54 = vmatprep.subr.mxu0 0.0
    %55 = vmatpush1.msra.mxu0 0.0
    %56 = vmatprep.subr.mxu0 0.0
    %57 = vmatpush1.msra.mxu0 0.0
    %58 = vmatprep.subr.mxu0 0.0
    %59 = vmatpush1.msra.mxu0 0.0
    %60 = vmatprep.subr.mxu0 0.0
    %61 = vmatpush1.msra.mxu0 0.0
    %62 = vmatprep.subr.mxu0 0.0
    %63 = vmatpush1.msra.mxu0 0.0
    %64 = vmatprep.subr.mxu0 0.0
    %65 = vmatpush1.msra.mxu0 0.0
    %66 = vmatprep.subr.mxu0 0.0
    %67 = vmatpush1.msra.mxu0 0.0
    %68 = vmatprep.subr.mxu0 0.0
    %69 = vmatpush1.msra.mxu0 0.0
    %70 = vmatprep.subr.mxu0 0.0
    %71 = vmatpush1.msra.mxu0 0.0
    %72 = vmatprep.subr.mxu0 0.0
    %73 = vmatpush1.msra.mxu0 0.0
    %74 = vmatprep.subr.mxu0 0.0
    %75 = vmatpush1.msra.mxu0 0.0
    %76 = vmatprep.subr.mxu0 0.0
    %77 = vmatpush1.msra.mxu0 0.0
    %78 = vmatprep.subr.mxu0 0.0
    %79 = vmatpush1.msra.mxu0 0.0
    %80 = vmatprep.subr.mxu0 0.0
    %81 = vmatpush1.msra.mxu0 0.0
    %82 = vmatprep.subr.mxu0 0.0
    %83 = vmatpush1.msra.mxu0 0.0
    %84 = vmatprep.subr.mxu0 0.0
    %85 = vmatpush1.msra.mxu0 0.0
    %86 = vmatprep.subr.mxu0 0.0
    %87 = vmatpush1.msra.mxu0 0.0
    %88 = vmatprep.subr.mxu0 0.0
    %89 = vmatpush1.msra.mxu0 0.0
    %90 = vmatprep.subr.mxu0 0.0
    %91 = vmatpush1.msra.mxu0 0.0
    %92 = vmatprep.subr.mxu0 0.0
    %93 = vmatpush1.msra.mxu0 0.0
    %94 = vmatprep.subr.mxu0 0.0
    %95 = vmatpush1.msra.mxu0 0.0
    %96 = vmatprep.subr.mxu0 0.0
    %97 = vmatpush1.msra.mxu0 0.0
    %98 = vmatprep.subr.mxu0 0.0
    %99 = vmatpush1.msra.mxu0 0.0
    %100 = vmatprep.mubr.f32.mxu0 0.0
    %101 = vmatmul.mubr.f32.gmra.mrb[0].mxu0 %v27
    %v102 = vpop.f32.mrb[0].mxu0
    %v103 = vadd.f32 %v23, %v102
    %v104 = vpop.f32.mrb[0].mxu0
    %105 = vmatprep.mubr.f32.mxu0 0.0
    %106 = vmatmul.mubr.f32.gmra.mrb[0].mxu0 %v30
    %v107 = vpop.f32.mrb[0].mxu0
    %v108 = vadd.f32 %v23, %v107
    %v109 = vpop.f32.mrb[0].mxu0
    %110 = vdwg.mxu0
    %v111 = vmax.f32 %v103, 0.0
    %v112 = vmax.f32 %v108, 0.0
    %vm113 = vcmask 261120
    %114 = vst.msk [vmem:[#allocation2] sm:$0xff] %vm113, %v111
    %115 = vst.msk [vmem:[#allocation2 + $0x8] sm:$0xff] %vm113, %v112
    // Predicated region
    $region14: #{linear_embedding_forward.1} parent=1 // pred_check
      _
    $region15: #{linear_embedding_forward.1} parent=1 // pred_check_branch
      %117 = sbr.rel (0) target = $region17
    $region16: #{linear_embedding_forward.1} parent=1 // pred_region
      %s119 = ssub.s32 256, 256
      %120 = vsyncadd [#allocation3], %s119
      %s121 = sshll.u32 [#allocation2], 4
      %s122 = int_to_ptr.vmem [resolvable:$true] %s121
      %127 = dma.vmem_to_hbm [thread:$0]  %s122, 256, %s3, [#allocation3], 128, 128, 8
    $region17: #{linear_embedding_forward.1} parent=1 // pred_fallthru
      _
    // Predicated region
    $region18: #{linear_embedding_forward.1} parent=1 // pred_check
      _
    $region19: #{linear_embedding_forward.1} parent=1 // pred_check_branch
      %129 = sbr.rel (0) target = $region21
    $region20: #{linear_embedding_forward.1} parent=1 // pred_region
      %130 = dma.done [#allocation3], 256
    $region21: #{linear_embedding_forward.1} parent=1 // pred_fallthru
      _
    %131 = vsyncpa [#allocation3], 1

</llo_original>
